<compile_context>
chip_gen: v5e
topology: v5e:2x2
jax: 0.10.0
libtpu: 0.0.40
codegen_flags: <defaults>
</compile_context>

<pallas_src>
import functools

import jax
import jax.numpy as jnp
from jax.experimental import pallas as pl
from jax.experimental.pallas import tpu as pltpu

_LANES = 128


def _round_up(a, b):
    return (a + b - 1) // b * b


def gp_mean_kernel(x_ref, xsq_ref, xtr_t_ref, xtsq_ref, alpha_ref,
                   out_ref, acc_ref, *, mean_const):
    # x_ref:     (tm, D)   test points / lengthscale  (f32 or bf16, MXU operand)
    # xsq_ref:   (tm, 1)   -0.5 * ||x_i/ls||^2  (f32, precomputed)
    # xtr_t_ref: (D, tn)   (training points / lengthscale)^T  (f32 or bf16)
    # xtsq_ref:  (1, tn)   -0.5 * ||x_train_j/ls||^2  (f32, precomputed)
    # alpha_ref: (1, tn)   cached GP weights * outputscale, lane-major (f32)
    # out_ref:   (tm, 1)   predictive mean ("energy") for this M tile
    # acc_ref:   (tm, 128) f32 lane-strip accumulator over the N grid axis
    k_idx = pl.program_id(1)

    @pl.when(k_idx == 0)
    def _():
        acc_ref[...] = jnp.zeros_like(acc_ref)

    # Cross term on the MXU, f32 accumulation.  (Constants already folded.)
    cross = jnp.dot(x_ref[...], xtr_t_ref[...],
                    preferred_element_type=jnp.float32)          # (tm, tn)

    # e = -0.5||u||^2 + u.v - 0.5||v||^2 = -0.5||u - v||^2 <= 0; min() guards
    # f32 rounding (equivalent to the usual max(d2, 0) clamp).
    e = xsq_ref[...] + cross + xtsq_ref[...]
    k = jnp.exp(jnp.minimum(e, 0.0))                              # EUP exp, f32

    # Weighted values; reduce only across lane strips with VPU adds here.
    ka = k * alpha_ref[...]                                       # (tm, tn)
    tn = ka.shape[-1]
    partial = ka[:, 0:_LANES]
    for s in range(1, tn // _LANES):                              # static unroll
        partial = partial + ka[:, s * _LANES:(s + 1) * _LANES]
    acc_ref[...] += partial

    @pl.when(k_idx == pl.num_programs(1) - 1)
    def _():
        # Single XLU lane reduce in the epilogue (out of the hot loop).
        out_ref[...] = (jnp.sum(acc_ref[...], axis=-1, keepdims=True)
                        + mean_const).astype(out_ref.dtype)


def gp_energy(x, x_train, alpha, *, lengthscale, outputscale, mean_const,
              tm=None, tn=1024, matmul_dtype=jnp.float32):
    """Predictive GP mean (the module's `energy`) via a Pallas TPU kernel."""
    M, D = x.shape
    N = x_train.shape[0]

    # --- tile sizes / padded extents (glue) ---------------------------------
    if tm is None:
        # Two balanced M tiles: no padded rows for the demo shapes and lets
        # v7x shard the "parallel" axis across its 2 TensorCores.  Single-TC
        # v5e/v6e only pay one extra ~600-cycle grid step for this choice.
        tm = _round_up(pl.cdiv(M, 2), 8)
    tm = _round_up(max(8, int(tm)), 8)
    tm = min(tm, _round_up(M, 8))
    Mp = _round_up(M, tm)

    Np = _round_up(N, _LANES)
    tn = min(_round_up(max(_LANES, int(tn)), _LANES), Np)
    while Np % tn != 0:          # snap tn down to an exact divisor of Np
        tn -= _LANES             # (always terminates at tn = 128)

    # --- operand construction (constants folded) ----------------------------
    inv_ls = 1.0 / float(lengthscale)
    u = x.astype(jnp.float32) * jnp.float32(inv_ls)          # (M, D)
    v = x_train.astype(jnp.float32) * jnp.float32(inv_ls)    # (N, D)

    # Zero-pad: padded alpha entries are 0 so padded training columns add
    # exactly 0; padded test rows give finite values that are sliced off.
    u_pad = jnp.zeros((Mp, D), jnp.float32).at[:M, :].set(u)
    v_pad = jnp.zeros((Np, D), jnp.float32).at[:N, :].set(v)
    a_pad = jnp.zeros((Np,), jnp.float32).at[:N].set(
        jnp.asarray(alpha, jnp.float32) * jnp.float32(outputscale))

    # MXU operands.  bf16 here only halves the xtr_t DMA bytes: at D=8 the
    # MXU is ~3-6% utilized, so it is never the binding unit.
    u_mm = u_pad.astype(matmul_dtype)                        # (Mp, D)
    v_mm_t = v_pad.astype(matmul_dtype).T                    # (D, Np)

    # Norms computed from the *rounded* operands so e = -0.5||u-v||^2 holds
    # exactly and min(e, 0) in the kernel is a faithful clamp.
    u_r = u_mm.astype(jnp.float32)
    v_r = v_mm_t.astype(jnp.float32)
    u_sq = -0.5 * jnp.sum(u_r * u_r, axis=-1, keepdims=True)  # (Mp, 1)
    v_sq = -0.5 * jnp.sum(v_r * v_r, axis=0, keepdims=True)   # (1, Np)
    alpha_row = a_pad.reshape(1, Np)                          # (1, Np)

    kernel = functools.partial(gp_mean_kernel, mean_const=float(mean_const))

    n_m_tiles = Mp // tm
    n_n_tiles = Np // tn
    itemsize = jnp.dtype(matmul_dtype).itemsize

    # --- VMEM budget computed from actual padded buffer sizes ---------------
    def _pad2(r, c, isz):
        return _round_up(r, 8) * _round_up(c, _LANES) * isz

    per_step_in = (_pad2(tm, D, itemsize) + _pad2(tm, 1, 4)
                   + _pad2(D, tn, itemsize) + 2 * _pad2(1, tn, 4))
    per_step_out = _pad2(tm, 1, 4)
    scratch_bytes = _pad2(tm, _LANES, 4)
    intermediates = 4 * tm * tn * 4        # a few (tm, tn) f32 temporaries
    vmem_needed = 2 * (per_step_in + per_step_out) + scratch_bytes + intermediates
    vmem_limit = int(max(16 << 20, min(2 * vmem_needed, 64 << 20)))

    cost = pl.CostEstimate(
        flops=int(2 * Mp * Np * D + 5 * Mp * Np),
        transcendentals=int(Mp * Np),
        bytes_accessed=int(Mp * D * itemsize + Mp * 4
                           + n_m_tiles * Np * (D * itemsize + 8)
                           + Mp * 4),
    )

    out = pl.pallas_call(
        kernel,
        out_shape=jax.ShapeDtypeStruct((Mp, 1), jnp.float32),
        grid_spec=pltpu.PrefetchScalarGridSpec(
            num_scalar_prefetch=0,
            grid=(n_m_tiles, n_n_tiles),
            in_specs=[
                pl.BlockSpec((tm, D), lambda i, k: (i, 0)),   # x / ls tile
                pl.BlockSpec((tm, 1), lambda i, k: (i, 0)),   # -0.5||x/ls||^2
                pl.BlockSpec((D, tn), lambda i, k: (0, k)),   # (X_train/ls)^T tile
                pl.BlockSpec((1, tn), lambda i, k: (0, k)),   # -0.5||X_tr/ls||^2
                pl.BlockSpec((1, tn), lambda i, k: (0, k)),   # alpha*outputscale
            ],
            out_specs=pl.BlockSpec((tm, 1), lambda i, k: (i, 0)),
            scratch_shapes=[pltpu.VMEM((tm, _LANES), jnp.float32)],
        ),
        compiler_params=pltpu.CompilerParams(
            dimension_semantics=("parallel", "arbitrary"),
            vmem_limit_bytes=vmem_limit,
        ),
        cost_estimate=cost,
    )(u_mm, u_sq, v_mm_t, v_sq, alpha_row)
    return out[:M, 0]                                         # (M,), like .mean


def _rbf(a, b, lengthscale, outputscale):
    # plain-JAX reference / training-cache helper
    d2 = (jnp.sum(a * a, -1, keepdims=True)
          - 2.0 * a @ b.T
          + jnp.sum(b * b, -1)[None, :])
    return outputscale * jnp.exp(-0.5 * jnp.maximum(d2, 0.0)
                                 / (lengthscale * lengthscale))


if __name__ == "__main__":
    # Deterministic synthetic "trained GP" parameters (no checkpoint load).
    M, N, D = 160, 384, 8
    lengthscale = 1.5
    outputscale = 0.8
    noise_var = 0.1
    mean_const = 0.25

    key = jax.random.PRNGKey(0)
    kx, ktr, ky = jax.random.split(key, 3)
    x = jax.random.normal(kx, (M, D), dtype=jnp.float32)         # test inputs
    x_train = jax.random.normal(ktr, (N, D), dtype=jnp.float32)  # train inputs
    y_train = jax.random.normal(ky, (N,), dtype=jnp.float32)     # train targets

    # Cached GP weights alpha = (K + sigma^2 I)^{-1}(y - mu0)  (plain-JAX glue).
    k_train = _rbf(x_train, x_train, lengthscale, outputscale)
    alpha = jnp.linalg.solve(
        k_train + noise_var * jnp.eye(N, dtype=jnp.float32),
        (y_train - mean_const)[:, None])[:, 0]

    # --- f32 path (works on v5e/v6e/v7x), strict 1e-4 check -----------------
    # Auto tiling: tm=80 (two exact M tiles), tn snaps to 384 (one exact tile).
    energy = gp_energy(x, x_train, alpha,
                       lengthscale=lengthscale, outputscale=outputscale,
                       mean_const=mean_const)
    energy = jax.block_until_ready(energy)

    ref = _rbf(x, x_train, lengthscale, outputscale) @ alpha + mean_const
    assert energy.shape == (M,)
    assert jnp.allclose(energy, ref, rtol=1e-4, atol=1e-4), (energy, ref)

    # --- bf16 matmul-operand path (legal on v5e/v6e/v7x MXUs; only a DMA-
    # byte saving here).  Checked against a reference built from the same
    # bf16-rounded, pre-scaled operands (elementwise/exp stay f32).
    energy_b = gp_energy(x, x_train, alpha,
                         lengthscale=lengthscale, outputscale=outputscale,
                         mean_const=mean_const, matmul_dtype=jnp.bfloat16)
    energy_b = jax.block_until_ready(energy_b)
    u_b = (x / lengthscale).astype(jnp.bfloat16).astype(jnp.float32)
    v_b = (x_train / lengthscale).astype(jnp.bfloat16).astype(jnp.float32)
    d2_b = (jnp.sum(u_b * u_b, -1, keepdims=True)
            - 2.0 * u_b @ v_b.T
            + jnp.sum(v_b * v_b, -1)[None, :])
    ref_b = (outputscale * jnp.exp(-0.5 * jnp.maximum(d2_b, 0.0))) @ alpha + mean_const
    assert jnp.allclose(energy_b, ref_b, rtol=1e-3, atol=1e-3), (energy_b, ref_b)

    print("KERNEL_OK")
</pallas_src>

<mosaic_0001>
module attributes {stable_mosaic.version = 11 : i64} {
  func.func @gp_mean_kernel(%arg0: i32, %arg1: i32, %arg2: memref<80x8xf32, #tpu.memory_space<vmem>>, %arg3: memref<80x1xf32, #tpu.memory_space<vmem>>, %arg4: memref<8x384xf32, #tpu.memory_space<vmem>>, %arg5: memref<1x384xf32, #tpu.memory_space<vmem>>, %arg6: memref<1x384xf32, #tpu.memory_space<vmem>>, %arg7: memref<80x1xf32, #tpu.memory_space<vmem>>, %arg8: memref<80x128xf32, #tpu.memory_space<vmem>>) attributes {dimension_semantics = [#tpu.dimension_semantics<parallel>, #tpu.dimension_semantics<arbitrary>], iteration_bounds = array<i64: 2, 1>, scalar_prefetch = 0 : i64, scratch_operands = 1 : i64, tpu.core_type = #tpu.core_type<tc>, window_params = [{transform_indices = @transform_0, window_bounds = array<i64: 80, 8>}, {transform_indices = @transform_1, window_bounds = array<i64: 80, 1>}, {transform_indices = @transform_2, window_bounds = array<i64: 8, 384>}, {transform_indices = @transform_3, window_bounds = array<i64: 1, 384>}, {transform_indices = @transform_4, window_bounds = array<i64: 1, 384>}, {transform_indices = @transform_5, window_bounds = array<i64: 80, 1>}]} {
    %c0_i32 = arith.constant 0 : i32
    %0 = arith.cmpi eq, %arg1, %c0_i32 : i32
    %1 = arith.extui %0 : i1 to i32
    %c0_i32_0 = arith.constant 0 : i32
    %2 = arith.cmpi ne, %1, %c0_i32_0 : i32
    scf.if %2 {
      %cst_17 = arith.constant 0.000000e+00 : f32
      %29 = vector.broadcast %cst_17 : f32 to vector<80x128xf32>
      %c0_18 = arith.constant 0 : index
      %c0_19 = arith.constant 0 : index
      %30 = vector.load %arg8[%c0_18, %c0_19] : memref<80x128xf32, #tpu.memory_space<vmem>>, vector<80x128xf32>
      tpu.vector_store %arg8[%c0_18, %c0_19], %29 {strides = array<i32>} : memref<80x128xf32, #tpu.memory_space<vmem>>, vector<80x128xf32>,
    } else {
    }
    %c0 = arith.constant 0 : index
    %c0_1 = arith.constant 0 : index
    %3 = vector.load %arg2[%c0, %c0_1] : memref<80x8xf32, #tpu.memory_space<vmem>>, vector<80x8xf32>
    %c0_2 = arith.constant 0 : index
    %c0_3 = arith.constant 0 : index
    %4 = vector.load %arg4[%c0_2, %c0_3] : memref<8x384xf32, #tpu.memory_space<vmem>>, vector<8x384xf32>
    %cst = arith.constant dense<0.000000e+00> : vector<80x384xf32>
    %5 = tpu.matmul %3, %4, %cst {dimension_numbers = #tpu.dot_dimension_numbers<[1], [0], [0], [1], [0, 0, 1, 1], [], []>} : vector<80x8xf32>, vector<8x384xf32>, vector<80x384xf32> -> vector<80x384xf32>
    %c0_4 = arith.constant 0 : index
    %c0_5 = arith.constant 0 : index
    %6 = vector.load %arg3[%c0_4, %c0_5] : memref<80x1xf32, #tpu.memory_space<vmem>>, vector<80x1xf32>
    %7 = vector.broadcast %6 : vector<80x1xf32> to vector<80x384xf32>
    %8 = arith.addf %7, %5 : vector<80x384xf32>
    %c0_6 = arith.constant 0 : index
    %c0_7 = arith.constant 0 : index
    %9 = vector.load %arg5[%c0_6, %c0_7] : memref<1x384xf32, #tpu.memory_space<vmem>>, vector<1x384xf32>
    %10 = vector.broadcast %9 : vector<1x384xf32> to vector<80x384xf32>
    %11 = arith.addf %8, %10 : vector<80x384xf32>
    %cst_8 = arith.constant 0.000000e+00 : f32
    %12 = vector.broadcast %cst_8 : f32 to vector<80x384xf32>
    %13 = arith.minimumf %11, %12 : vector<80x384xf32>
    %14 = math.exp %13 : vector<80x384xf32>
    %c0_9 = arith.constant 0 : index
    %c0_10 = arith.constant 0 : index
    %15 = vector.load %arg6[%c0_9, %c0_10] : memref<1x384xf32, #tpu.memory_space<vmem>>, vector<1x384xf32>
    %16 = vector.broadcast %15 : vector<1x384xf32> to vector<80x384xf32>
    %17 = arith.mulf %14, %16 : vector<80x384xf32>
    %18 = vector.extract_strided_slice %17 {offsets = [0, 0], sizes = [80, 128], strides = [1, 1]} : vector<80x384xf32> to vector<80x128xf32>
    %19 = vector.extract_strided_slice %17 {offsets = [0, 128], sizes = [80, 128], strides = [1, 1]} : vector<80x384xf32> to vector<80x128xf32>
    %20 = arith.addf %18, %19 : vector<80x128xf32>
    %21 = vector.extract_strided_slice %17 {offsets = [0, 256], sizes = [80, 128], strides = [1, 1]} : vector<80x384xf32> to vector<80x128xf32>
    %22 = arith.addf %20, %21 : vector<80x128xf32>
    %c0_11 = arith.constant 0 : index
    %c0_12 = arith.constant 0 : index
    %23 = vector.load %arg8[%c0_11, %c0_12] : memref<80x128xf32, #tpu.memory_space<vmem>>, vector<80x128xf32>
    %24 = arith.addf %23, %22 : vector<80x128xf32>
    %c0_13 = arith.constant 0 : index
    %c0_14 = arith.constant 0 : index
    %25 = vector.load %arg8[%c0_13, %c0_14] : memref<80x128xf32, #tpu.memory_space<vmem>>, vector<80x128xf32>
    tpu.vector_store %arg8[%c0_13, %c0_14], %24 {strides = array<i32>} : memref<80x128xf32, #tpu.memory_space<vmem>>, vector<80x128xf32>,
    %c0_i32_15 = arith.constant 0 : i32
    %26 = arith.cmpi eq, %arg1, %c0_i32_15 : i32
    %27 = arith.extui %26 : i1 to i32
    %c0_i32_16 = arith.constant 0 : i32
    %28 = arith.cmpi ne, %27, %c0_i32_16 : i32
    scf.if %28 {
      %c0_17 = arith.constant 0 : index
      %c0_18 = arith.constant 0 : index
      %29 = vector.load %arg8[%c0_17, %c0_18] : memref<80x128xf32, #tpu.memory_space<vmem>>, vector<80x128xf32>
      %cst_19 = arith.constant dense<0.000000e+00> : vector<80xf32>
      %30 = vector.multi_reduction <add>, %29, %cst_19 [1] : vector<80x128xf32> to vector<80xf32>
      %31 = vector.shape_cast %30 : vector<80xf32> to vector<80x1xf32>
      %cst_20 = arith.constant 2.500000e-01 : f32
      %32 = vector.broadcast %cst_20 : f32 to vector<80x1xf32>
      %33 = arith.addf %31, %32 : vector<80x1xf32>
      %c0_21 = arith.constant 0 : index
      %c0_22 = arith.constant 0 : index
      %34 = vector.load %arg7[%c0_21, %c0_22] : memref<80x1xf32, #tpu.memory_space<vmem>>, vector<80x1xf32>
      tpu.vector_store %arg7[%c0_21, %c0_22], %33 {strides = array<i32>} : memref<80x1xf32, #tpu.memory_space<vmem>>, vector<80x1xf32>,
    } else {
    }
    return
  }
  func.func @transform_0(%arg0: i32, %arg1: i32) -> (i32, i32) {
    %c0_i32 = arith.constant 0 : i32
    %c0_i32_0 = arith.constant 0 : i32
    return %arg0, %c0_i32 : i32, i32
  }
  func.func @transform_1(%arg0: i32, %arg1: i32) -> (i32, i32) {
    %c0_i32 = arith.constant 0 : i32
    %c0_i32_0 = arith.constant 0 : i32
    return %arg0, %c0_i32 : i32, i32
  }
  func.func @transform_2(%arg0: i32, %arg1: i32) -> (i32, i32) {
    %c0_i32 = arith.constant 0 : i32
    %c0_i32_0 = arith.constant 0 : i32
    return %c0_i32, %arg1 : i32, i32
  }
  func.func @transform_3(%arg0: i32, %arg1: i32) -> (i32, i32) {
    %c0_i32 = arith.constant 0 : i32
    %c0_i32_0 = arith.constant 0 : i32
    return %c0_i32, %arg1 : i32, i32
  }
  func.func @transform_4(%arg0: i32, %arg1: i32) -> (i32, i32) {
    %c0_i32 = arith.constant 0 : i32
    %c0_i32_0 = arith.constant 0 : i32
    return %c0_i32, %arg1 : i32, i32
  }
  func.func @transform_5(%arg0: i32, %arg1: i32) -> (i32, i32) {
    %c0_i32 = arith.constant 0 : i32
    %c0_i32_0 = arith.constant 0 : i32
    return %arg0, %c0_i32 : i32, i32
  }
}

</mosaic_0001>

<llo_original>
// kernel: tpu_custom_call.1
$region0: #{tpu_custom_call.1}
  #allocation0 [shape = 'u32[]', space=smem, size = 0x4, offset = 0x4, fixed_abs, tag = 'smem constant byte address 0x4 - core index']
  #allocation1 [shape = 'u32[72,128]{1,0:T(1,128)}', space=vmem, size = 0x9000, scoped, tag = 'internal scratch']
  #allocation2 [shape = 'f32[80,128]{1,0:T(8,128)}', space=vmem, size = 0xa000, scoped, tag = 'scratch operand']
  %s0 = inlined_call_operand.vmem [shape: f32[160,8], index: 0, kind: input, shape index: {}]
  %s1 = inlined_call_operand.vmem [shape: f32[160,1], index: 1, kind: input, shape index: {}]
  %s2 = inlined_call_operand.vmem [shape: f32[8,384], index: 2, kind: input, shape index: {}]
  %s3 = inlined_call_operand.vmem [shape: f32[1,384], index: 3, kind: input, shape index: {}]
  %s4 = inlined_call_operand.vmem [shape: f32[1,384], index: 4, kind: input, shape index: {}]
  %s5 = inlined_call_operand.vmem [shape: f32[160,1], index: 5, kind: output, shape index: {}]
  %s6 = sld [smem:[#allocation0]]
  $region61: #{tpu_custom_call.1} parent=0
    _
  %s8 = ssub.s32 1, %s6
  %s9 = scalar_select 0, %s8, %s6
  loop: start=0, step=1, limit=4
  $region2: #{tpu_custom_call.1} parent=0 // loop_pre_header
    _
  $region3: #{tpu_custom_call.1} parent=0 // loop_header
    %s11 = sphi 0, %s15
    %p12 = scmp.ge.s32.totalorder %s11, 4
    %s18 = sphi 0, %s30
    %s19 = sphi 0, %s26
    %s20 = sphi 0, %s18
    %s21 = sphi 0, %s19
    %s22 = sphi 0, %s20
    %s23 = sphi 0, %s21
    %s33 = sphi 0, %s35
    %s36 = sphi 0, %s33
    %s37 = sphi 0, %s36
    %s53 = sphi 0, %s37
    %s59 = sphi 0, %s61
    %s62 = sphi 0, %s59
    %s63 = sphi 0, %s62
    %s79 = sphi 0, %s63
    %s85 = sphi 0, %s87
    %s88 = sphi 0, %s85
    %s89 = sphi 0, %s88
    %s105 = sphi 0, %s89
    %s111 = sphi 0, %s113
    %s114 = sphi 0, %s111
    %s115 = sphi 0, %s114
    %s131 = sphi 0, %s115
    %s137 = sphi 0, %s139
    %s140 = sphi 0, %s137
    %s141 = sphi 0, %s140
    %s157 = sphi 0, %s141
    %s163 = sphi 0, %s165
    %s166 = sphi 0, %s163
    %s167 = sphi 0, %s166
    %s183 = sphi 0, %s167
  $region4: #{tpu_custom_call.1} parent=0 // loop_header_branch
    %14 = sbr.rel (%p12) target = $region8
  $region5: #{tpu_custom_call.1} parent=0 // loop_body
    %s16 = ssub.s32 %s11, 1
    %s17 = ssub.s32 %s11, 2
    %s24 = sadd.s32 1, %s19
    %p25 = scmp.ge.s32.totalorder %s24, 1
    %s26 = scalar_select %p25, 0, %s24
    %s27 = sadd.s32 1, %s18
    %s28 = scalar_select %p25, %s27, %s18
    %p29 = scmp.ge.s32.totalorder %s28, 2
    %s30 = scalar_select %p29, 0, %s28
    %s31 = ssub.s32 %s18, %s30
    %p32 = scmp.eq.s32.totalorder %s31, 0
    %s34 = sadd.s32 %s33, 1
    %s35 = scalar_select %p32, %s33, %s34
    %p38 = pneg %p32
    %p39 = scmp.eq.s32.totalorder %s11, 1
    %p40 = por %p38, %p39
    %p41 = scmp.ne.s32.totalorder %s33, %s36
    %p42 = scmp.eq.s32.totalorder %s11, 0
    %p43 = por %p41, %p42
    %p44 = scmp.ne.s32.totalorder %s33, %s36
    %p45 = scmp.eq.s32.totalorder %s16, 1
    %p46 = por %p44, %p45
    %p47 = scmp.ne.s32.totalorder %s36, %s37
    %p48 = scmp.eq.s32.totalorder %s16, 0
    %p49 = por %p47, %p48
    %p50 = scmp.ne.s32.totalorder %s36, %s37
    %p51 = scmp.eq.s32.totalorder %s17, 1
    %p52 = por %p50, %p51
    %p54 = scmp.ne.s32.totalorder %s37, %s53
    %p55 = scmp.eq.s32.totalorder %s17, 0
    %p56 = por %p54, %p55
    %s57 = ssub.s32 %s18, %s30
    %p58 = scmp.eq.s32.totalorder %s57, 0
    %s60 = sadd.s32 %s59, 1
    %s61 = scalar_select %p58, %s59, %s60
    %p64 = pneg %p58
    %p65 = scmp.eq.s32.totalorder %s11, 1
    %p66 = por %p64, %p65
    %p67 = scmp.ne.s32.totalorder %s59, %s62
    %p68 = scmp.eq.s32.totalorder %s11, 0
    %p69 = por %p67, %p68
    %p70 = scmp.ne.s32.totalorder %s59, %s62
    %p71 = scmp.eq.s32.totalorder %s16, 1
    %p72 = por %p70, %p71
    %p73 = scmp.ne.s32.totalorder %s62, %s63
    %p74 = scmp.eq.s32.totalorder %s16, 0
    %p75 = por %p73, %p74
    %p76 = scmp.ne.s32.totalorder %s62, %s63
    %p77 = scmp.eq.s32.totalorder %s17, 1
    %p78 = por %p76, %p77
    %p80 = scmp.ne.s32.totalorder %s63, %s79
    %p81 = scmp.eq.s32.totalorder %s17, 0
    %p82 = por %p80, %p81
    %s83 = ssub.s32 %s19, %s26
    %p84 = scmp.eq.s32.totalorder %s83, 0
    %s86 = sadd.s32 %s85, 1
    %s87 = scalar_select %p84, %s85, %s86
    %p90 = pneg %p84
    %p91 = scmp.eq.s32.totalorder %s11, 1
    %p92 = por %p90, %p91
    %p93 = scmp.ne.s32.totalorder %s85, %s88
    %p94 = scmp.eq.s32.totalorder %s11, 0
    %p95 = por %p93, %p94
    %p96 = scmp.ne.s32.totalorder %s85, %s88
    %p97 = scmp.eq.s32.totalorder %s16, 1
    %p98 = por %p96, %p97
    %p99 = scmp.ne.s32.totalorder %s88, %s89
    %p100 = scmp.eq.s32.totalorder %s16, 0
    %p101 = por %p99, %p100
    %p102 = scmp.ne.s32.totalorder %s88, %s89
    %p103 = scmp.eq.s32.totalorder %s17, 1
    %p104 = por %p102, %p103
    %p106 = scmp.ne.s32.totalorder %s89, %s105
    %p107 = scmp.eq.s32.totalorder %s17, 0
    %p108 = por %p106, %p107
    %s109 = ssub.s32 %s19, %s26
    %p110 = scmp.eq.s32.totalorder %s109, 0
    %s112 = sadd.s32 %s111, 1
    %s113 = scalar_select %p110, %s111, %s112
    %p116 = pneg %p110
    %p117 = scmp.eq.s32.totalorder %s11, 1
    %p118 = por %p116, %p117
    %p119 = scmp.ne.s32.totalorder %s111, %s114
    %p120 = scmp.eq.s32.totalorder %s11, 0
    %p121 = por %p119, %p120
    %p122 = scmp.ne.s32.totalorder %s111, %s114
    %p123 = scmp.eq.s32.totalorder %s16, 1
    %p124 = por %p122, %p123
    %p125 = scmp.ne.s32.totalorder %s114, %s115
    %p126 = scmp.eq.s32.totalorder %s16, 0
    %p127 = por %p125, %p126
    %p128 = scmp.ne.s32.totalorder %s114, %s115
    %p129 = scmp.eq.s32.totalorder %s17, 1
    %p130 = por %p128, %p129
    %p132 = scmp.ne.s32.totalorder %s115, %s131
    %p133 = scmp.eq.s32.totalorder %s17, 0
    %p134 = por %p132, %p133
    %s135 = ssub.s32 %s19, %s26
    %p136 = scmp.eq.s32.totalorder %s135, 0
    %s138 = sadd.s32 %s137, 1
    %s139 = scalar_select %p136, %s137, %s138
    %p142 = pneg %p136
    %p143 = scmp.eq.s32.totalorder %s11, 1
    %p144 = por %p142, %p143
    %p145 = scmp.ne.s32.totalorder %s137, %s140
    %p146 = scmp.eq.s32.totalorder %s11, 0
    %p147 = por %p145, %p146
    %p148 = scmp.ne.s32.totalorder %s137, %s140
    %p149 = scmp.eq.s32.totalorder %s16, 1
    %p150 = por %p148, %p149
    %p151 = scmp.ne.s32.totalorder %s140, %s141
    %p152 = scmp.eq.s32.totalorder %s16, 0
    %p153 = por %p151, %p152
    %p154 = scmp.ne.s32.totalorder %s140, %s141
    %p155 = scmp.eq.s32.totalorder %s17, 1
    %p156 = por %p154, %p155
    %p158 = scmp.ne.s32.totalorder %s141, %s157
    %p159 = scmp.eq.s32.totalorder %s17, 0
    %p160 = por %p158, %p159
    %s161 = ssub.s32 %s18, %s30
    %p162 = scmp.eq.s32.totalorder %s161, 0
    %s164 = sadd.s32 %s163, 1
    %s165 = scalar_select %p162, %s163, %s164
    %p168 = pneg %p162
    %p169 = scmp.eq.s32.totalorder %s11, 1
    %p170 = por %p168, %p169
    %p171 = scmp.ne.s32.totalorder %s163, %s166
    %p172 = scmp.eq.s32.totalorder %s11, 0
    %p173 = por %p171, %p172
    %p174 = scmp.ne.s32.totalorder %s163, %s166
    %p175 = scmp.eq.s32.totalorder %s16, 1
    %p176 = por %p174, %p175
    %p177 = scmp.ne.s32.totalorder %s166, %s167
    %p178 = scmp.eq.s32.totalorder %s16, 0
    %p179 = por %p177, %p178
    %p180 = scmp.ne.s32.totalorder %s166, %s167
    %p181 = scmp.eq.s32.totalorder %s17, 1
    %p182 = por %p180, %p181
    %p184 = scmp.ne.s32.totalorder %s167, %s183
    %p185 = scmp.eq.s32.totalorder %s17, 0
    %p186 = por %p184, %p185
    %p187 = scmp.le.s32.totalorder 1, %s11
    %p188 = scmp.lt.s32.totalorder %s11, 3
    %p189 = pnand %p187, %p188
    %p190 = pneg %p189
    // Predicated region
    $region9: #{tpu_custom_call.1} parent=5 // pred_check
      _
    $region10: #{tpu_custom_call.1} parent=5 // pred_check_branch
      %192 = sbr.rel (%p189) target = $region12
    $region11: #{tpu_custom_call.1} parent=5 // pred_region
      %s193 = ssub.s32 %s11, 1
      // Predicated region
      $region13: #{tpu_custom_call.1} parent=11 // pred_check
        %p194 = pneg %p101
      $region14: #{tpu_custom_call.1} parent=11 // pred_check_branch
        %196 = sbr.rel (%p194) target = $region16
      $region15: #{tpu_custom_call.1} parent=11 // pred_region
        %s197 = smul.u32 3, %s21
        %p198 = scmp.lt.s32.totalorder %s197, 2
        %s199 = scalar_select %p198, %s197, 2
        %s200 = smul.addr %s199, 8
        %s201 = scalar_lea.vmem %s2, %s200
        %s202 = smul.u32 3, %s21
      $region16: #{tpu_custom_call.1} parent=11 // pred_fallthru
        _
      // Predicated region
      $region17: #{tpu_custom_call.1} parent=11 // pred_check
        %p203 = pneg %p127
      $region18: #{tpu_custom_call.1} parent=11 // pred_check_branch
        %205 = sbr.rel (%p203) target = $region20
      $region19: #{tpu_custom_call.1} parent=11 // pred_region
        %s206 = smul.u32 3, %s21
        %p207 = scmp.lt.s32.totalorder %s206, 2
        %s208 = scalar_select %p207, %s206, 2
        %s209 = scalar_lea.vmem %s3, %s208
        %s210 = smul.u32 3, %s21
      $region20: #{tpu_custom_call.1} parent=11 // pred_fallthru
        _
      // Predicated region
      $region21: #{tpu_custom_call.1} parent=11 // pred_check
        %p211 = pneg %p153
      $region22: #{tpu_custom_call.1} parent=11 // pred_check_branch
        %213 = sbr.rel (%p211) target = $region24
      $region23: #{tpu_custom_call.1} parent=11 // pred_region
        %s214 = smul.u32 3, %s21
        %p215 = scmp.lt.s32.totalorder %s214, 2
        %s216 = scalar_select %p215, %s214, 2
        %s217 = scalar_lea.vmem %s4, %s216
        %s218 = smul.u32 3, %s21
      $region24: #{tpu_custom_call.1} parent=11 // pred_fallthru
        _
    $region12: #{tpu_custom_call.1} parent=5 // pred_fallthru
      _
    %p219 = scmp.lt.s32.totalorder %s11, 2
    // Predicated region
    $region25: #{tpu_custom_call.1} parent=5 // pred_check
      %p220 = pneg %p219
    $region26: #{tpu_custom_call.1} parent=5 // pred_check_branch
      %222 = sbr.rel (%p220) target = $region28
    $region27: #{tpu_custom_call.1} parent=5 // pred_region
      // Predicated region
      $region29: #{tpu_custom_call.1} parent=27 // pred_check
        %p223 = pneg %p43
      $region30: #{tpu_custom_call.1} parent=27 // pred_check_branch
        %225 = sbr.rel (%p223) target = $region32
      $region31: #{tpu_custom_call.1} parent=27 // pred_region
        %s226 = smul.u32 10, %s18
        %p227 = scmp.lt.s32.totalorder %s226, 19
        %s228 = scalar_select %p227, %s226, 19
        %s229 = smul.addr %s228, 8
        %s230 = scalar_lea.vmem %s0, %s229
        %s231 = smul.u32 10, %s18
      $region32: #{tpu_custom_call.1} parent=27 // pred_fallthru
        _
      // Predicated region
      $region33: #{tpu_custom_call.1} parent=27 // pred_check
        %p232 = pneg %p69
      $region34: #{tpu_custom_call.1} parent=27 // pred_check_branch
        %234 = sbr.rel (%p232) target = $region36
      $region35: #{tpu_custom_call.1} parent=27 // pred_region
        %s235 = smul.u32 10, %s18
        %p236 = scmp.lt.s32.totalorder %s235, 19
        %s237 = scalar_select %p236, %s235, 19
        %s238 = smul.addr %s237, 8
        %s239 = scalar_lea.vmem %s1, %s238
        %s240 = smul.u32 10, %s18
      $region36: #{tpu_custom_call.1} parent=27 // pred_fallthru
        _
    $region28: #{tpu_custom_call.1} parent=5 // pred_fallthru
      _
    %p241 = scmp.le.s32.totalorder 1, %s11
    %p242 = scmp.lt.s32.totalorder %s11, 3
    %p243 = pnand %p241, %p242
    %p244 = pneg %p243
    // Predicated region
    $region37: #{tpu_custom_call.1} parent=5 // pred_check
      _
    $region38: #{tpu_custom_call.1} parent=5 // pred_check_branch
      %246 = sbr.rel (%p243) target = $region40
    $region39: #{tpu_custom_call.1} parent=5 // pred_region
      %s247 = ssub.s32 %s11, 1
      %s248 = smul.u32 10, %s20
      %p249 = scmp.lt.s32.totalorder %s248, 19
      %s250 = scalar_select %p249, %s248, 19
      %s251 = smul.addr %s250, 8
      %s252 = scalar_lea.vmem %s0, %s251
      %p253 = pneg %p49
      %p254 = pneg %p46
      %s255 = smul.u32 10, %s20
      %p256 = scmp.lt.s32.totalorder %s255, 19
      %s257 = scalar_select %p256, %s255, 19
      %s258 = smul.addr %s257, 8
      %s259 = scalar_lea.vmem %s1, %s258
      %p260 = pneg %p75
      %p261 = pneg %p72
      %s262 = smul.u32 3, %s21
      %p263 = scmp.lt.s32.totalorder %s262, 2
      %s264 = scalar_select %p263, %s262, 2
      %s265 = smul.addr %s264, 8
      %s266 = scalar_lea.vmem %s2, %s265
      %p267 = pneg %p101
      %p268 = pneg %p98
      %s269 = smul.u32 3, %s21
      %p270 = scmp.lt.s32.totalorder %s269, 2
      %s271 = scalar_select %p270, %s269, 2
      %s272 = scalar_lea.vmem %s3, %s271
      %p273 = pneg %p127
      %p274 = pneg %p124
      %s275 = smul.u32 3, %s21
      %p276 = scmp.lt.s32.totalorder %s275, 2
      %s277 = scalar_select %p276, %s275, 2
      %s278 = scalar_lea.vmem %s4, %s277
      %p279 = pneg %p153
      %p280 = pneg %p150
      %p281 = pneg %p179
      %p282 = pneg %p176
      %s283 = smul.u32 10, %s20
      %p284 = scmp.lt.s32.totalorder %s283, 19
      %s285 = scalar_select %p284, %s283, 19
      %s286 = smul.addr %s285, 8
      %s287 = scalar_lea.vmem %s5, %s286
      %s288 = smul.u32 10, %s20
      %p289 = scmp.lt.s32.totalorder %s288, 19
      %s290 = scalar_select %p289, %s288, 19
      %s291 = smul.addr %s290, 8
      %s292 = scalar_lea.vmem %s0, %s291
      %s293 = smul.u32 10, %s20
      %s294 = smul.u32 10, %s20
      %p295 = scmp.lt.s32.totalorder %s294, 19
      %s296 = scalar_select %p295, %s294, 19
      %s297 = smul.addr %s296, 8
      %s298 = scalar_lea.vmem %s1, %s297
      %s299 = smul.u32 10, %s20
      %s300 = smul.u32 3, %s21
      %p301 = scmp.lt.s32.totalorder %s300, 2
      %s302 = scalar_select %p301, %s300, 2
      %s303 = smul.addr %s302, 8
      %s304 = scalar_lea.vmem %s2, %s303
      %s305 = smul.u32 3, %s21
      %s306 = smul.u32 3, %s21
      %p307 = scmp.lt.s32.totalorder %s306, 2
      %s308 = scalar_select %p307, %s306, 2
      %s309 = scalar_lea.vmem %s3, %s308
      %s310 = smul.u32 3, %s21
      %s311 = smul.u32 3, %s21
      %p312 = scmp.lt.s32.totalorder %s311, 2
      %s313 = scalar_select %p312, %s311, 2
      %s314 = scalar_lea.vmem %s4, %s313
      %s315 = smul.u32 3, %s21
      %s316 = smul.u32 10, %s20
      %p317 = scmp.lt.s32.totalorder %s316, 19
      %s318 = scalar_select %p317, %s316, 19
      %s319 = smul.addr %s318, 8
      %s320 = scalar_lea.vmem %s5, %s319
      %s321 = smul.u32 10, %s20
      %p322 = scmp.eq.s32.totalorder %s21, 0
      // Predicated region
      $region41: #{tpu_custom_call.1} parent=39 // pred_check
        %p323 = pneg %p322
      $region42: #{tpu_custom_call.1} parent=39 // pred_check_branch
        %325 = sbr.rel (%p323) target = $region44
      $region43: #{tpu_custom_call.1} parent=39 // pred_region
        %326 = vst [vmem:[#allocation2] sm:$0xff] 0.0
        %327 = vst [vmem:[#allocation2 + $0x8] sm:$0xff] 0.0
        %328 = vst [vmem:[#allocation2 + $0x10] sm:$0xff] 0.0
        %329 = vst [vmem:[#allocation2 + $0x18] sm:$0xff] 0.0
        %330 = vst [vmem:[#allocation2 + $0x20] sm:$0xff] 0.0
        %331 = vst [vmem:[#allocation2 + $0x28] sm:$0xff] 0.0
        %332 = vst [vmem:[#allocation2 + $0x30] sm:$0xff] 0.0
        %333 = vst [vmem:[#allocation2 + $0x38] sm:$0xff] 0.0
        %334 = vst [vmem:[#allocation2 + $0x40] sm:$0xff] 0.0
        %335 = vst [vmem:[#allocation2 + $0x48] sm:$0xff] 0.0
      $region44: #{tpu_custom_call.1} parent=39 // pred_fallthru
        _
      %v336 = vld [vmem:[%s292] sm:$0xff]
      %v337 = vld [vmem:[%s292 + $0x8] sm:$0xff]
      %v338 = vld [vmem:[%s292 + $0x10] sm:$0xff]
      %v339 = vld [vmem:[%s292 + $0x18] sm:$0xff]
      %v340 = vld [vmem:[%s292 + $0x20] sm:$0xff]
      %v341 = vld [vmem:[%s292 + $0x28] sm:$0xff]
      %v342 = vld [vmem:[%s292 + $0x30] sm:$0xff]
      %v343 = vld [vmem:[%s292 + $0x38] sm:$0xff]
      %v344 = vld [vmem:[%s292 + $0x40] sm:$0xff]
      %v345 = vld [vmem:[%s292 + $0x48] sm:$0xff]
      %v346 = vld [vmem:[%s304] sm:$0xff]
      %v347 = vld [vmem:[%s304 + $0x8] sm:$0xff]
      %v348 = vld [vmem:[%s304 + $0x10] sm:$0xff]
      %vm349 = vcmask 64512
      %v351 = vsel %vm349, %v336, 0
      %v354 = vsel %vm349, %v337, 0
      %v357 = vsel %vm349, %v338, 0
      %v360 = vsel %vm349, %v339, 0
      %v363 = vsel %vm349, %v340, 0
      %v366 = vsel %vm349, %v341, 0
      %v369 = vsel %vm349, %v342, 0
      %v372 = vsel %vm349, %v343, 0
      %v375 = vsel %vm349, %v344, 0
      %v378 = vsel %vm349, %v345, 0
      %380 = vmatpush.msra.mxu0 0.0
      %381 = vmatpush.msra.mxu0 0.0
      %382 = vmatpush.msra.mxu0 0.0
      %383 = vmatpush.msra.mxu0 0.0
      %384 = vmatpush.msra.mxu0 0.0
      %385 = vmatpush.msra.mxu0 0.0
      %386 = vmatpush.msra.mxu0 0.0
      %387 = vmatpush.msra.mxu0 0.0
      %388 = vmatpush.msra.mxu0 0.0
      %389 = vmatpush.msra.mxu0 0.0
      %390 = vmatpush.msra.mxu0 0.0
      %391 = vmatpush.msra.mxu0 0.0
      %392 = vmatpush.msra.mxu0 0.0
      %393 = vmatpush.msra.mxu0 0.0
      %394 = vmatpush.msra.mxu0 0.0
      %395 = vmatpush.msra.mxu0 %v346
      %396 = vmatmul.f32.gmra.mxu0 %v351
      %v397 = vpop.f32.mrf.mxu0
      %v398 = vadd.f32 0.0, %v397
      %399 = vmatmul.f32.gmra.mxu0 %v354
      %v400 = vpop.f32.mrf.mxu0
      %v401 = vadd.f32 0.0, %v400
      %402 = vmatmul.f32.gmra.mxu0 %v357
      %v403 = vpop.f32.mrf.mxu0
      %v404 = vadd.f32 0.0, %v403
      %405 = vmatmul.f32.gmra.mxu0 %v360
      %v406 = vpop.f32.mrf.mxu0
      %v407 = vadd.f32 0.0, %v406
      %408 = vmatmul.f32.gmra.mxu0 %v363
      %v409 = vpop.f32.mrf.mxu0
      %v410 = vadd.f32 0.0, %v409
      %411 = vmatmul.f32.gmra.mxu0 %v366
      %v412 = vpop.f32.mrf.mxu0
      %v413 = vadd.f32 0.0, %v412
      %414 = vmatmul.f32.gmra.mxu0 %v369
      %v415 = vpop.f32.mrf.mxu0
      %v416 = vadd.f32 0.0, %v415
      %417 = vmatmul.f32.gmra.mxu0 %v372
      %v418 = vpop.f32.mrf.mxu0
      %v419 = vadd.f32 0.0, %v418
      %420 = vmatmul.f32.gmra.mxu0 %v375
      %v421 = vpop.f32.mrf.mxu0
      %v422 = vadd.f32 0.0, %v421
      %423 = vmatmul.f32.gmra.mxu0 %v378
      %v424 = vpop.f32.mrf.mxu0
      %v425 = vadd.f32 0.0, %v424
      %426 = vdwg.mxu0
      %427 = vmatpush.msra.mxu0 0.0
      %428 = vmatpush.msra.mxu0 0.0
      %429 = vmatpush.msra.mxu0 0.0
      %430 = vmatpush.msra.mxu0 0.0
      %431 = vmatpush.msra.mxu0 0.0
      %432 = vmatpush.msra.mxu0 0.0
      %433 = vmatpush.msra.mxu0 0.0
      %434 = vmatpush.msra.mxu0 0.0
      %435 = vmatpush.msra.mxu0 0.0
      %436 = vmatpush.msra.mxu0 0.0
      %437 = vmatpush.msra.mxu0 0.0
      %438 = vmatpush.msra.mxu0 0.0
      %439 = vmatpush.msra.mxu0 0.0
      %440 = vmatpush.msra.mxu0 0.0
      %441 = vmatpush.msra.mxu0 0.0
      %442 = vmatpush.msra.mxu0 %v347
      %443 = vmatmul.f32.gmra.mxu0 %v351
      %v444 = vpop.f32.mrf.mxu0
      %v445 = vadd.f32 0.0, %v444
      %446 = vmatmul.f32.gmra.mxu0 %v354
      %v447 = vpop.f32.mrf.mxu0
      %v448 = vadd.f32 0.0, %v447
      %449 = vmatmul.f32.gmra.mxu0 %v357
      %v450 = vpop.f32.mrf.mxu0
      %v451 = vadd.f32 0.0, %v450
      %452 = vmatmul.f32.gmra.mxu0 %v360
      %v453 = vpop.f32.mrf.mxu0
      %v454 = vadd.f32 0.0, %v453
      %455 = vmatmul.f32.gmra.mxu0 %v363
      %v456 = vpop.f32.mrf.mxu0
      %v457 = vadd.f32 0.0, %v456
      %458 = vmatmul.f32.gmra.mxu0 %v366
      %v459 = vpop.f32.mrf.mxu0
      %v460 = vadd.f32 0.0, %v459
      %461 = vmatmul.f32.gmra.mxu0 %v369
      %v462 = vpop.f32.mrf.mxu0
      %v463 = vadd.f32 0.0, %v462
      %464 = vmatmul.f32.gmra.mxu0 %v372
      %v465 = vpop.f32.mrf.mxu0
      %v466 = vadd.f32 0.0, %v465
      %467 = vmatmul.f32.gmra.mxu0 %v375
      %v468 = vpop.f32.mrf.mxu0
      %v469 = vadd.f32 0.0, %v468
      %470 = vmatmul.f32.gmra.mxu0 %v378
      %v471 = vpop.f32.mrf.mxu0
      %v472 = vadd.f32 0.0, %v471
      %473 = vdwg.mxu0
      %474 = vmatpush.msra.mxu0 0.0
      %475 = vmatpush.msra.mxu0 0.0
      %476 = vmatpush.msra.mxu0 0.0
      %477 = vmatpush.msra.mxu0 0.0
      %478 = vmatpush.msra.mxu0 0.0
      %479 = vmatpush.msra.mxu0 0.0
      %480 = vmatpush.msra.mxu0 0.0
      %481 = vmatpush.msra.mxu0 0.0
      %482 = vmatpush.msra.mxu0 0.0
      %483 = vmatpush.msra.mxu0 0.0
      %484 = vmatpush.msra.mxu0 0.0
      %485 = vmatpush.msra.mxu0 0.0
      %486 = vmatpush.msra.mxu0 0.0
      %487 = vmatpush.msra.mxu0 0.0
      %488 = vmatpush.msra.mxu0 0.0
      %489 = vmatpush.msra.mxu0 %v348
      %490 = vmatmul.f32.gmra.mxu0 %v351
      %v491 = vpop.f32.mrf.mxu0
      %v492 = vadd.f32 0.0, %v491
      %493 = vmatmul.f32.gmra.mxu0 %v354
      %v494 = vpop.f32.mrf.mxu0
      %v495 = vadd.f32 0.0, %v494
      %496 = vmatmul.f32.gmra.mxu0 %v357
      %v497 = vpop.f32.mrf.mxu0
      %v498 = vadd.f32 0.0, %v497
      %499 = vmatmul.f32.gmra.mxu0 %v360
      %v500 = vpop.f32.mrf.mxu0
      %v501 = vadd.f32 0.0, %v500
      %502 = vmatmul.f32.gmra.mxu0 %v363
      %v503 = vpop.f32.mrf.mxu0
      %v504 = vadd.f32 0.0, %v503
      %505 = vmatmul.f32.gmra.mxu0 %v366
      %v506 = vpop.f32.mrf.mxu0
      %v507 = vadd.f32 0.0, %v506
      %508 = vmatmul.f32.gmra.mxu0 %v369
      %v509 = vpop.f32.mrf.mxu0
      %v510 = vadd.f32 0.0, %v509
      %511 = vmatmul.f32.gmra.mxu0 %v372
      %v512 = vpop.f32.mrf.mxu0
      %v513 = vadd.f32 0.0, %v512
      %514 = vmatmul.f32.gmra.mxu0 %v375
      %v515 = vpop.f32.mrf.mxu0
      %v516 = vadd.f32 0.0, %v515
      %517 = vmatmul.f32.gmra.mxu0 %v378
      %v518 = vpop.f32.mrf.mxu0
      %v519 = vadd.f32 0.0, %v518
      %520 = vdwg.mxu0
      %v521 = vld [vmem:[%s298] sm:$0xff]
      %v522 = vld [vmem:[%s298 + $0x8] sm:$0xff]
      %v523 = vld [vmem:[%s298 + $0x10] sm:$0xff]
      %v524 = vld [vmem:[%s298 + $0x18] sm:$0xff]
      %v525 = vld [vmem:[%s298 + $0x20] sm:$0xff]
      %v526 = vld [vmem:[%s298 + $0x28] sm:$0xff]
      %v527 = vld [vmem:[%s298 + $0x30] sm:$0xff]
      %v528 = vld [vmem:[%s298 + $0x38] sm:$0xff]
      %v529 = vld [vmem:[%s298 + $0x40] sm:$0xff]
      %v530 = vld [vmem:[%s298 + $0x48] sm:$0xff]
      %532 = vset.pattern.permute.xlu0 0
      %533 = vperm.xlu0 %532, %v521
      %v534 = vpop.permute.xlu0 %533
      %537 = vset.pattern.permute.xlu0 0
      %538 = vperm.xlu0 %537, %v522
      %v539 = vpop.permute.xlu0 %538
      %542 = vset.pattern.permute.xlu0 0
      %543 = vperm.xlu0 %542, %v523
      %v544 = vpop.permute.xlu0 %543
      %547 = vset.pattern.permute.xlu0 0
      %548 = vperm.xlu0 %547, %v524
      %v549 = vpop.permute.xlu0 %548
      %552 = vset.pattern.permute.xlu0 0
      %553 = vperm.xlu0 %552, %v525
      %v554 = vpop.permute.xlu0 %553
      %557 = vset.pattern.permute.xlu0 0
      %558 = vperm.xlu0 %557, %v526
      %v559 = vpop.permute.xlu0 %558
      %562 = vset.pattern.permute.xlu0 0
      %563 = vperm.xlu0 %562, %v527
      %v564 = vpop.permute.xlu0 %563
      %567 = vset.pattern.permute.xlu0 0
      %568 = vperm.xlu0 %567, %v528
      %v569 = vpop.permute.xlu0 %568
      %572 = vset.pattern.permute.xlu0 0
      %573 = vperm.xlu0 %572, %v529
      %v574 = vpop.permute.xlu0 %573
      %577 = vset.pattern.permute.xlu0 0
      %578 = vperm.xlu0 %577, %v530
      %v579 = vpop.permute.xlu0 %578
      %v581 = vadd.f32 %v534, %v398
      %v582 = vadd.f32 %v534, %v445
      %v583 = vadd.f32 %v534, %v492
      %v584 = vadd.f32 %v539, %v401
      %v585 = vadd.f32 %v539, %v448
      %v586 = vadd.f32 %v539, %v495
      %v587 = vadd.f32 %v544, %v404
      %v588 = vadd.f32 %v544, %v451
      %v589 = vadd.f32 %v544, %v498
      %v590 = vadd.f32 %v549, %v407
      %v591 = vadd.f32 %v549, %v454
      %v592 = vadd.f32 %v549, %v501
      %v593 = vadd.f32 %v554, %v410
      %v594 = vadd.f32 %v554, %v457
      %v595 = vadd.f32 %v554, %v504
      %v596 = vadd.f32 %v559, %v413
      %v597 = vadd.f32 %v559, %v460
      %v598 = vadd.f32 %v559, %v507
      %v599 = vadd.f32 %v564, %v416
      %v600 = vadd.f32 %v564, %v463
      %v601 = vadd.f32 %v564, %v510
      %v602 = vadd.f32 %v569, %v419
      %v603 = vadd.f32 %v569, %v466
      %v604 = vadd.f32 %v569, %v513
      %v605 = vadd.f32 %v574, %v422
      %v606 = vadd.f32 %v574, %v469
      %v607 = vadd.f32 %v574, %v516
      %v608 = vadd.f32 %v579, %v425
      %v609 = vadd.f32 %v579, %v472
      %v610 = vadd.f32 %v579, %v519
      %v611 = vld [vmem:[%s309] sm:$0x7]
      %v613 = vperm.slane %v611, 0
      %v614 = vperm.slane %v611, 1
      %v615 = vperm.slane %v611, 2
      %v619 = vadd.f32 %v581, %v613
      %v620 = vadd.f32 %v582, %v614
      %v621 = vadd.f32 %v583, %v615
      %v622 = vadd.f32 %v584, %v613
      %v623 = vadd.f32 %v585, %v614
      %v624 = vadd.f32 %v586, %v615
      %v625 = vadd.f32 %v587, %v613
      %v626 = vadd.f32 %v588, %v614
      %v627 = vadd.f32 %v589, %v615
      %v628 = vadd.f32 %v590, %v613
      %v629 = vadd.f32 %v591, %v614
      %v630 = vadd.f32 %v592, %v615
      %v631 = vadd.f32 %v593, %v613
      %v632 = vadd.f32 %v594, %v614
      %v633 = vadd.f32 %v595, %v615
      %v634 = vadd.f32 %v596, %v613
      %v635 = vadd.f32 %v597, %v614
      %v636 = vadd.f32 %v598, %v615
      %v637 = vadd.f32 %v599, %v613
      %v638 = vadd.f32 %v600, %v614
      %v639 = vadd.f32 %v601, %v615
      %v640 = vadd.f32 %v602, %v613
      %v641 = vadd.f32 %v603, %v614
      %v642 = vadd.f32 %v604, %v615
      %v643 = vadd.f32 %v605, %v613
      %v644 = vadd.f32 %v606, %v614
      %v645 = vadd.f32 %v607, %v615
      %v646 = vadd.f32 %v608, %v613
      %v647 = vadd.f32 %v609, %v614
      %v648 = vadd.f32 %v610, %v615
      %v649 = vmin.f32 %v619, 0.0
      %v650 = vmin.f32 %v620, 0.0
      %v651 = vmin.f32 %v621, 0.0
      %v652 = vmin.f32 %v622, 0.0
      %v653 = vmin.f32 %v623, 0.0
      %v654 = vmin.f32 %v624, 0.0
      %v655 = vmin.f32 %v625, 0.0
      %v656 = vmin.f32 %v626, 0.0
      %v657 = vmin.f32 %v627, 0.0
      %v658 = vmin.f32 %v628, 0.0
      %v659 = vmin.f32 %v629, 0.0
      %v660 = vmin.f32 %v630, 0.0
      %v661 = vmin.f32 %v631, 0.0
      %v662 = vmin.f32 %v632, 0.0
      %v663 = vmin.f32 %v633, 0.0
      %v664 = vmin.f32 %v634, 0.0
      %v665 = vmin.f32 %v635, 0.0
      %v666 = vmin.f32 %v636, 0.0
      %v667 = vmin.f32 %v637, 0.0
      %v668 = vmin.f32 %v638, 0.0
      %v669 = vmin.f32 %v639, 0.0
      %v670 = vmin.f32 %v640, 0.0
      %v671 = vmin.f32 %v641, 0.0
      %v672 = vmin.f32 %v642, 0.0
      %v673 = vmin.f32 %v643, 0.0
      %v674 = vmin.f32 %v644, 0.0
      %v675 = vmin.f32 %v645, 0.0
      %v676 = vmin.f32 %v646, 0.0
      %v677 = vmin.f32 %v647, 0.0
      %v678 = vmin.f32 %v648, 0.0
      %v679 = vmul.f32 %v649, 1.442695
      %v680 = vpow.pop %v679
      %v681 = vmul.f32 %v650, 1.442695
      %v682 = vpow.pop %v681
      %v683 = vmul.f32 %v651, 1.442695
      %v684 = vpow.pop %v683
      %v685 = vmul.f32 %v652, 1.442695
      %v686 = vpow.pop %v685
      %v687 = vmul.f32 %v653, 1.442695
      %v688 = vpow.pop %v687
      %v689 = vmul.f32 %v654, 1.442695
      %v690 = vpow.pop %v689
      %v691 = vmul.f32 %v655, 1.442695
      %v692 = vpow.pop %v691
      %v693 = vmul.f32 %v656, 1.442695
      %v694 = vpow.pop %v693
      %v695 = vmul.f32 %v657, 1.442695
      %v696 = vpow.pop %v695
      %v697 = vmul.f32 %v658, 1.442695
      %v698 = vpow.pop %v697
      %v699 = vmul.f32 %v659, 1.442695
      %v700 = vpow.pop %v699
      %v701 = vmul.f32 %v660, 1.442695
      %v702 = vpow.pop %v701
      %v703 = vmul.f32 %v661, 1.442695
      %v704 = vpow.pop %v703
      %v705 = vmul.f32 %v662, 1.442695
      %v706 = vpow.pop %v705
      %v707 = vmul.f32 %v663, 1.442695
      %v708 = vpow.pop %v707
      %v709 = vmul.f32 %v664, 1.442695
      %v710 = vpow.pop %v709
      %v711 = vmul.f32 %v665, 1.442695
      %v712 = vpow.pop %v711
      %v713 = vmul.f32 %v666, 1.442695
      %v714 = vpow.pop %v713
      %v715 = vmul.f32 %v667, 1.442695
      %v716 = vpow.pop %v715
      %v717 = vmul.f32 %v668, 1.442695
      %v718 = vpow.pop %v717
      %v719 = vmul.f32 %v669, 1.442695
      %v720 = vpow.pop %v719
      %v721 = vmul.f32 %v670, 1.442695
      %v722 = vpow.pop %v721
      %v723 = vmul.f32 %v671, 1.442695
      %v724 = vpow.pop %v723
      %v725 = vmul.f32 %v672, 1.442695
      %v726 = vpow.pop %v725
      %v727 = vmul.f32 %v673, 1.442695
      %v728 = vpow.pop %v727
      %v729 = vmul.f32 %v674, 1.442695
      %v730 = vpow.pop %v729
      %v731 = vmul.f32 %v675, 1.442695
      %v732 = vpow.pop %v731
      %v733 = vmul.f32 %v676, 1.442695
      %v734 = vpow.pop %v733
      %v735 = vmul.f32 %v677, 1.442695
      %v736 = vpow.pop %v735
      %v737 = vmul.f32 %v678, 1.442695
      %v738 = vpow.pop %v737
      %v739 = vld [vmem:[%s314] sm:$0x7]
      %v741 = vperm.slane %v739, 0
      %v742 = vperm.slane %v739, 1
      %v743 = vperm.slane %v739, 2
      %v747 = vmul.f32 %v680, %v741
      %v748 = vmul.f32 %v682, %v742
      %v749 = vmul.f32 %v684, %v743
      %v750 = vmul.f32 %v686, %v741
      %v751 = vmul.f32 %v688, %v742
      %v752 = vmul.f32 %v690, %v743
      %v753 = vmul.f32 %v692, %v741
      %v754 = vmul.f32 %v694, %v742
      %v755 = vmul.f32 %v696, %v743
      %v756 = vmul.f32 %v698, %v741
      %v757 = vmul.f32 %v700, %v742
      %v758 = vmul.f32 %v702, %v743
      %v759 = vmul.f32 %v704, %v741
      %v760 = vmul.f32 %v706, %v742
      %v761 = vmul.f32 %v708, %v743
      %v762 = vmul.f32 %v710, %v741
      %v763 = vmul.f32 %v712, %v742
      %v764 = vmul.f32 %v714, %v743
      %v765 = vmul.f32 %v716, %v741
      %v766 = vmul.f32 %v718, %v742
      %v767 = vmul.f32 %v720, %v743
      %v768 = vmul.f32 %v722, %v741
      %v769 = vmul.f32 %v724, %v742
      %v770 = vmul.f32 %v726, %v743
      %v771 = vmul.f32 %v728, %v741
      %v772 = vmul.f32 %v730, %v742
      %v773 = vmul.f32 %v732, %v743
      %v774 = vmul.f32 %v734, %v741
      %v775 = vmul.f32 %v736, %v742
      %v776 = vmul.f32 %v738, %v743
      %v777 = vadd.f32 %v747, %v748
      %v778 = vadd.f32 %v750, %v751
      %v779 = vadd.f32 %v753, %v754
      %v780 = vadd.f32 %v756, %v757
      %v781 = vadd.f32 %v759, %v760
      %v782 = vadd.f32 %v762, %v763
      %v783 = vadd.f32 %v765, %v766
      %v784 = vadd.f32 %v768, %v769
      %v785 = vadd.f32 %v771, %v772
      %v786 = vadd.f32 %v774, %v775
      %v787 = vadd.f32 %v777, %v749
      %v788 = vadd.f32 %v778, %v752
      %v789 = vadd.f32 %v779, %v755
      %v790 = vadd.f32 %v780, %v758
      %v791 = vadd.f32 %v781, %v761
      %v792 = vadd.f32 %v782, %v764
      %v793 = vadd.f32 %v783, %v767
      %v794 = vadd.f32 %v784, %v770
      %v795 = vadd.f32 %v785, %v773
      %v796 = vadd.f32 %v786, %v776
      %v797 = vld [vmem:[#allocation2] sm:$0xff]
      %v798 = vld [vmem:[#allocation2 + $0x8] sm:$0xff]
      %v799 = vld [vmem:[#allocation2 + $0x10] sm:$0xff]
      %v800 = vld [vmem:[#allocation2 + $0x18] sm:$0xff]
      %v801 = vld [vmem:[#allocation2 + $0x20] sm:$0xff]
      %v802 = vld [vmem:[#allocation2 + $0x28] sm:$0xff]
      %v803 = vld [vmem:[#allocation2 + $0x30] sm:$0xff]
      %v804 = vld [vmem:[#allocation2 + $0x38] sm:$0xff]
      %v805 = vld [vmem:[#allocation2 + $0x40] sm:$0xff]
      %v806 = vld [vmem:[#allocation2 + $0x48] sm:$0xff]
      %v807 = vadd.f32 %v797, %v787
      %v808 = vadd.f32 %v798, %v788
      %v809 = vadd.f32 %v799, %v789
      %v810 = vadd.f32 %v800, %v790
      %v811 = vadd.f32 %v801, %v791
      %v812 = vadd.f32 %v802, %v792
      %v813 = vadd.f32 %v803, %v793
      %v814 = vadd.f32 %v804, %v794
      %v815 = vadd.f32 %v805, %v795
      %v816 = vadd.f32 %v806, %v796
      %817 = vst [vmem:[#allocation2] sm:$0xff] %v807
      %818 = vst [vmem:[#allocation2 + $0x8] sm:$0xff] %v808
      %819 = vst [vmem:[#allocation2 + $0x10] sm:$0xff] %v809
      %820 = vst [vmem:[#allocation2 + $0x18] sm:$0xff] %v810
      %821 = vst [vmem:[#allocation2 + $0x20] sm:$0xff] %v811
      %822 = vst [vmem:[#allocation2 + $0x28] sm:$0xff] %v812
      %823 = vst [vmem:[#allocation2 + $0x30] sm:$0xff] %v813
      %824 = vst [vmem:[#allocation2 + $0x38] sm:$0xff] %v814
      %825 = vst [vmem:[#allocation2 + $0x40] sm:$0xff] %v815
      %826 = vst [vmem:[#allocation2 + $0x48] sm:$0xff] %v816
      // Predicated region
      $region45: #{tpu_custom_call.1} parent=39 // pred_check
        %p827 = pneg %p322
      $region46: #{tpu_custom_call.1} parent=39 // pred_check_branch
        %829 = sbr.rel (%p827) target = $region48
      $region47: #{tpu_custom_call.1} parent=39 // pred_region
        %v830 = vld [vmem:[#allocation2] sm:$0xff]
        %v831 = vld [vmem:[#allocation2 + $0x8] sm:$0xff]
        %v832 = vld [vmem:[#allocation2 + $0x10] sm:$0xff]
        %v833 = vld [vmem:[#allocation2 + $0x18] sm:$0xff]
        %v834 = vld [vmem:[#allocation2 + $0x20] sm:$0xff]
        %v835 = vld [vmem:[#allocation2 + $0x28] sm:$0xff]
        %v836 = vld [vmem:[#allocation2 + $0x30] sm:$0xff]
        %v837 = vld [vmem:[#allocation2 + $0x38] sm:$0xff]
        %v838 = vld [vmem:[#allocation2 + $0x40] sm:$0xff]
        %v839 = vld [vmem:[#allocation2 + $0x48] sm:$0xff]
        %840 = vadd.xlane.f32.xlu0 %v830
        %v841 = vpop.xlane.xlu0 %840
        %842 = vadd.xlane.f32.xlu0 %v831
        %v843 = vpop.xlane.xlu0 %842
        %844 = vadd.xlane.f32.xlu0 %v832
        %v845 = vpop.xlane.xlu0 %844
        %846 = vadd.xlane.f32.xlu0 %v833
        %v847 = vpop.xlane.xlu0 %846
        %848 = vadd.xlane.f32.xlu0 %v834
        %v849 = vpop.xlane.xlu0 %848
        %850 = vadd.xlane.f32.xlu0 %v835
        %v851 = vpop.xlane.xlu0 %850
        %852 = vadd.xlane.f32.xlu0 %v836
        %v853 = vpop.xlane.xlu0 %852
        %854 = vadd.xlane.f32.xlu0 %v837
        %v855 = vpop.xlane.xlu0 %854
        %856 = vadd.xlane.f32.xlu0 %v838
        %v857 = vpop.xlane.xlu0 %856
        %858 = vadd.xlane.f32.xlu0 %v839
        %v859 = vpop.xlane.xlu0 %858
        %v860 = vadd.f32 %v841, 0.25
        %v861 = vadd.f32 %v843, 0.25
        %v862 = vadd.f32 %v845, 0.25
        %v863 = vadd.f32 %v847, 0.25
        %v864 = vadd.f32 %v849, 0.25
        %v865 = vadd.f32 %v851, 0.25
        %v866 = vadd.f32 %v853, 0.25
        %v867 = vadd.f32 %v855, 0.25
        %v868 = vadd.f32 %v857, 0.25
        %v869 = vadd.f32 %v859, 0.25
        %vm870 = vcmask 7168
        %871 = vst.msk [vmem:[%s320] sm:$0xff] %vm870, %v860
        %872 = vst.msk [vmem:[%s320 + $0x8] sm:$0xff] %vm870, %v861
        %873 = vst.msk [vmem:[%s320 + $0x10] sm:$0xff] %vm870, %v862
        %874 = vst.msk [vmem:[%s320 + $0x18] sm:$0xff] %vm870, %v863
        %875 = vst.msk [vmem:[%s320 + $0x20] sm:$0xff] %vm870, %v864
        %876 = vst.msk [vmem:[%s320 + $0x28] sm:$0xff] %vm870, %v865
        %877 = vst.msk [vmem:[%s320 + $0x30] sm:$0xff] %vm870, %v866
        %878 = vst.msk [vmem:[%s320 + $0x38] sm:$0xff] %vm870, %v867
        %879 = vst.msk [vmem:[%s320 + $0x40] sm:$0xff] %vm870, %v868
        %880 = vst.msk [vmem:[%s320 + $0x48] sm:$0xff] %vm870, %v869
      $region48: #{tpu_custom_call.1} parent=39 // pred_fallthru
        _
      %s881 = smul.u32 10, %s20
      %p882 = scmp.lt.s32.totalorder %s881, 19
      %s883 = scalar_select %p882, %s881, 19
      %s884 = smul.addr %s883, 8
      %s885 = scalar_lea.vmem %s5, %s884
      // Predicated region
      $region49: #{tpu_custom_call.1} parent=39 // pred_check
        %p886 = pneg %p176
      $region50: #{tpu_custom_call.1} parent=39 // pred_check_branch
        %888 = sbr.rel (%p886) target = $region52
      $region51: #{tpu_custom_call.1} parent=39 // pred_region
        %s889 = smul.u32 10, %s20
      $region52: #{tpu_custom_call.1} parent=39 // pred_fallthru
        _
    $region40: #{tpu_custom_call.1} parent=5 // pred_fallthru
      _
    %p890 = scmp.le.s32.totalorder 2, %s11
    // Predicated region
    $region53: #{tpu_custom_call.1} parent=5 // pred_check
      %p891 = pneg %p890
    $region54: #{tpu_custom_call.1} parent=5 // pred_check_branch
      %893 = sbr.rel (%p891) target = $region56
    $region55: #{tpu_custom_call.1} parent=5 // pred_region
      %s894 = ssub.s32 %s11, 2
      // Predicated region
      $region57: #{tpu_custom_call.1} parent=55 // pred_check
        %p895 = pneg %p182
      $region58: #{tpu_custom_call.1} parent=55 // pred_check_branch
        %897 = sbr.rel (%p895) target = $region60
      $region59: #{tpu_custom_call.1} parent=55 // pred_region
        %s898 = smul.u32 10, %s22
        %p899 = scmp.lt.s32.totalorder %s898, 19
        %s900 = scalar_select %p899, %s898, 19
        %s901 = smul.addr %s900, 8
        %s902 = scalar_lea.vmem %s5, %s901
      $region60: #{tpu_custom_call.1} parent=55 // pred_fallthru
        _
    $region56: #{tpu_custom_call.1} parent=5 // pred_fallthru
      _
  $region6: #{tpu_custom_call.1} parent=0 // loop_footer
    %s15 = sadd.s32 1, %s11
  $region7: #{tpu_custom_call.1} parent=0 // loop_footer_branch
    %10 = sbr.rel target = $region3
  $region8: #{tpu_custom_call.1} parent=0 // loop_exit
    _

</llo_original>
